<compile_context>
chip_gen: v6e
topology: v6e:2x2x1
jax: 0.10.0
libtpu: 0.0.40
codegen_flags: <defaults>
</compile_context>

<pallas_src>
import functools
import math

import jax
import jax.numpy as jnp
from jax.experimental import pallas as pl
from jax.experimental.pallas import tpu as pltpu

S = 30.0
M = 0.4
_EXP_NEG_SM = math.exp(-S * M)   # exp(-s*m), folded as a Python constant
_LANE = 128


def am_softmax_kernel(x_ref, labels_ref, out_ref, esum_ref, texp_ref, *,
                      n_cols, tn, tc):
    k = pl.program_id(1)           # class-tile index (reduction axis, innermost)
    nk = pl.num_programs(1)
    ragged_c = (n_cols % tc) != 0  # Python-static: does a ragged last tile exist?

    # Re-init the per-row carries at the start of each batch tile's class sweep.
    @pl.when(k == 0)
    def _init():
        esum_ref[...] = jnp.zeros_like(esum_ref)
        texp_ref[...] = jnp.zeros_like(texp_ref)

    # Hoisted per grid step (not per chunk): lane iota + label load.
    base_iota = jax.lax.broadcasted_iota(jnp.int32, (tn, _LANE), 1)
    labels = labels_ref[...]                     # (tn, 1) int32

    def accumulate(last_tile):
        # Accumulators are carried in vregs across the unrolled chunk loop and
        # written to the lane-dense (tn, 128) scratch once per grid step.
        e_acc = esum_ref[...]
        t_acc = texp_ref[...]
        if last_tile:
            col0 = (nk - 1) * tc                 # static first column of last tile
            rel = labels - col0
        else:
            rel = labels - k * tc
        for j in range(tc // _LANE):
            if last_tile:
                valid = n_cols - (col0 + j * _LANE)   # Python constant
                if valid <= 0:
                    break                             # fully padded chunk: skip load
            xj = x_ref[:, j * _LANE:(j + 1) * _LANE].astype(jnp.float32)
            ej = jnp.exp(S * xj)                      # EUP
            is_t = base_iota == (rel - j * _LANE)     # target column in this chunk?
            t_acc = t_acc + jnp.where(is_t, ej, 0.0)  # exp(s * x[i, y_i]) term
            if last_tile and valid < _LANE:           # only the one partial chunk
                ej = jnp.where(base_iota < valid, ej, 0.0)
            e_acc = e_acc + ej                        # running sum over all classes
        esum_ref[...] = e_acc
        texp_ref[...] = t_acc

    def finalize():
        # Single cross-lane reduce per class sweep, then per-row loss.
        t_exp = jnp.sum(texp_ref[...], axis=1, keepdims=True)   # (tn, 1)
        e_sum = jnp.sum(esum_ref[...], axis=1, keepdims=True)   # (tn, 1)
        numerator = jnp.log(t_exp) - (S * M)                    # = s*(x[i,y]-m)
        denominator = t_exp * _EXP_NEG_SM + (e_sum - t_exp)     # exp(num)+sum_excl
        out_ref[...] = numerator - jnp.log(denominator)         # padded rows clipped

    if ragged_c:
        if nk > 1:
            @pl.when(k < nk - 1)
            def _body():
                accumulate(last_tile=False)       # mask-free hot path

        @pl.when(k == nk - 1)
        def _last():
            accumulate(last_tile=True)            # statically specialized masking
            finalize()
    else:
        accumulate(last_tile=False)               # no masking anywhere

        @pl.when(k == nk - 1)
        def _last():
            finalize()


def _round_up(v, m):
    return ((v + m - 1) // m) * m


def _pick_tiles(n, c, itemsize):
    """Dtype-aware tile sizes: ~4 MiB x buffer, (8, 128)-aligned blocks."""
    tn = min(128, _round_up(n, 8))
    block_bytes = 4 * 1024 * 1024
    tc_cap = max(_LANE, (block_bytes // (tn * itemsize)) // _LANE * _LANE)
    tc = min(tc_cap, _round_up(c, _LANE))
    return tn, tc


def additive_margin_softmax_loss(x, labels, *, tn=None, tc=None):
    """x: (N, C) float32/bfloat16 cosines; labels: (N,) int.  Returns scalar f32."""
    n, c = x.shape
    auto_tn, auto_tc = _pick_tiles(n, c, x.dtype.itemsize)
    tn = auto_tn if tn is None else _round_up(tn, 8)
    tc = auto_tc if tc is None else _round_up(tc, _LANE)

    labels2d = labels.astype(jnp.int32).reshape(n, 1)
    grid = (pl.cdiv(n, tn), pl.cdiv(c, tc))
    kernel = functools.partial(am_softmax_kernel, n_cols=c, tn=tn, tc=tc)

    per_row = pl.pallas_call(
        kernel,
        out_shape=jax.ShapeDtypeStruct((n, 1), jnp.float32),
        grid_spec=pltpu.PrefetchScalarGridSpec(
            num_scalar_prefetch=0,
            grid=grid,
            in_specs=[
                pl.BlockSpec((tn, tc), lambda i, k: (i, k)),   # x tile
                pl.BlockSpec((tn, 1), lambda i, k: (i, 0)),    # labels (same over k)
            ],
            out_specs=pl.BlockSpec((tn, 1), lambda i, k: (i, 0)),  # per-row losses
            scratch_shapes=[
                pltpu.VMEM((tn, _LANE), jnp.float32),   # lane-dense exp-sum carry
                pltpu.VMEM((tn, _LANE), jnp.float32),   # lane-dense target-exp carry
            ]),
        compiler_params=pltpu.CompilerParams(
            dimension_semantics=("parallel", "arbitrary")),
        cost_estimate=pl.CostEstimate(
            flops=6 * n * c,
            transcendentals=n * c + 2 * n,
            bytes_accessed=n * c * x.dtype.itemsize + 8 * n),
    )(x, labels2d)
    # Tiny final reduction in the wrapper keeps the batch axis parallelizable.
    return -jnp.sum(per_row[:, 0]) / n


def _reference(x, labels):
    # Pure-JAX reference mirroring the PyTorch forward.
    n = x.shape[0]
    xf = x.astype(jnp.float32)
    target = xf[jnp.arange(n), labels]
    numerator = S * (target - M)
    onehot = jax.nn.one_hot(labels, x.shape[1], dtype=bool)
    sum_excl = jnp.sum(jnp.where(onehot, 0.0, jnp.exp(S * xf)), axis=1)
    L = numerator - jnp.log(jnp.exp(numerator) + sum_excl)
    return -jnp.mean(L)


if __name__ == "__main__":
    key = jax.random.PRNGKey(0)
    kx, kl = jax.random.split(key)

    # 20 samples x 380 classes: 380 is not a multiple of 128, so both runs
    # exercise ragged class tiles (partial chunk mask + fully-padded chunk skip)
    # and the small-tile run also exercises a ragged batch tile.
    N, C = 20, 380
    x = jnp.tanh(jax.random.normal(kx, (N, C), dtype=jnp.float32))  # cosines in (-1, 1)
    labels = jax.random.randint(kl, (N,), 0, C, dtype=jnp.int32)

    ref = _reference(x, labels)

    # Small tiles: 3 batch tiles (last ragged) x 2 class tiles (last ragged).
    loss_tiled = additive_margin_softmax_loss(x, labels, tn=8, tc=256)
    jax.block_until_ready(loss_tiled)
    assert jnp.allclose(loss_tiled, ref, rtol=1e-4, atol=1e-4), (loss_tiled, ref)

    # Auto tiles: single batch/class tile, mask-free fast path except last chunk.
    loss_auto = additive_margin_softmax_loss(x, labels)
    jax.block_until_ready(loss_auto)
    assert jnp.allclose(loss_auto, ref, rtol=1e-4, atol=1e-4), (loss_auto, ref)

    print("KERNEL_OK")
</pallas_src>

<mosaic_0001>
module attributes {stable_mosaic.version = 11 : i64} {
  func.func @am_softmax_kernel(%arg0: i32, %arg1: i32, %arg2: memref<8x256xf32, #tpu.memory_space<vmem>>, %arg3: memref<8x1xi32, #tpu.memory_space<vmem>>, %arg4: memref<8x1xf32, #tpu.memory_space<vmem>>, %arg5: memref<8x128xf32, #tpu.memory_space<vmem>>, %arg6: memref<8x128xf32, #tpu.memory_space<vmem>>) attributes {dimension_semantics = [#tpu.dimension_semantics<parallel>, #tpu.dimension_semantics<arbitrary>], iteration_bounds = array<i64: 3, 2>, scalar_prefetch = 0 : i64, scratch_operands = 2 : i64, tpu.core_type = #tpu.core_type<tc>, window_params = [{transform_indices = @transform_0, window_bounds = array<i64: 8, 256>}, {transform_indices = @transform_1, window_bounds = array<i64: 8, 1>}, {transform_indices = @transform_2, window_bounds = array<i64: 8, 1>}]} {
    %c0_i32 = arith.constant 0 : i32
    %0 = arith.cmpi eq, %arg1, %c0_i32 : i32
    %1 = arith.extui %0 : i1 to i32
    %c0_i32_0 = arith.constant 0 : i32
    %2 = arith.cmpi ne, %1, %c0_i32_0 : i32
    scf.if %2 {
      %cst = arith.constant 0.000000e+00 : f32
      %11 = vector.broadcast %cst : f32 to vector<8x128xf32>
      %c0_5 = arith.constant 0 : index
      %c0_6 = arith.constant 0 : index
      %12 = vector.load %arg5[%c0_5, %c0_6] : memref<8x128xf32, #tpu.memory_space<vmem>>, vector<8x128xf32>
      tpu.vector_store %arg5[%c0_5, %c0_6], %11 {strides = array<i32>} : memref<8x128xf32, #tpu.memory_space<vmem>>, vector<8x128xf32>,
      %cst_7 = arith.constant 0.000000e+00 : f32
      %13 = vector.broadcast %cst_7 : f32 to vector<8x128xf32>
      %c0_8 = arith.constant 0 : index
      %c0_9 = arith.constant 0 : index
      %14 = vector.load %arg6[%c0_8, %c0_9] : memref<8x128xf32, #tpu.memory_space<vmem>>, vector<8x128xf32>
      tpu.vector_store %arg6[%c0_8, %c0_9], %13 {strides = array<i32>} : memref<8x128xf32, #tpu.memory_space<vmem>>, vector<8x128xf32>,
    } else {
    }
    %3 = tpu.iota {dimensions = array<i32: 1>} : vector<8x128xi32>
    %c0 = arith.constant 0 : index
    %c0_1 = arith.constant 0 : index
    %4 = vector.load %arg3[%c0, %c0_1] : memref<8x1xi32, #tpu.memory_space<vmem>>, vector<8x1xi32>
    %c1_i32 = arith.constant 1 : i32
    %5 = arith.cmpi slt, %arg1, %c1_i32 : i32
    %6 = arith.extui %5 : i1 to i32
    %c0_i32_2 = arith.constant 0 : i32
    %7 = arith.cmpi ne, %6, %c0_i32_2 : i32
    scf.if %7 {
      %c0_5 = arith.constant 0 : index
      %c0_6 = arith.constant 0 : index
      %11 = vector.load %arg5[%c0_5, %c0_6] : memref<8x128xf32, #tpu.memory_space<vmem>>, vector<8x128xf32>
      %c0_7 = arith.constant 0 : index
      %c0_8 = arith.constant 0 : index
      %12 = vector.load %arg6[%c0_7, %c0_8] : memref<8x128xf32, #tpu.memory_space<vmem>>, vector<8x128xf32>
      %c256_i32 = arith.constant 256 : i32
      %13 = arith.muli %arg1, %c256_i32 : i32
      %14 = vector.broadcast %13 : i32 to vector<8x1xi32>
      %15 = arith.subi %4, %14 : vector<8x1xi32>
      %c0_9 = arith.constant 0 : index
      %c0_10 = arith.constant 0 : index
      %16 = vector.load %arg2[%c0_9, %c0_10] : memref<8x256xf32, #tpu.memory_space<vmem>>, vector<8x128xf32>
      %cst = arith.constant 3.000000e+01 : f32
      %17 = vector.broadcast %cst : f32 to vector<8x128xf32>
      %18 = arith.mulf %17, %16 : vector<8x128xf32>
      %19 = math.exp %18 : vector<8x128xf32>
      %c0_i32_11 = arith.constant 0 : i32
      %20 = vector.broadcast %c0_i32_11 : i32 to vector<8x1xi32>
      %21 = arith.subi %15, %20 : vector<8x1xi32>
      %22 = vector.broadcast %21 : vector<8x1xi32> to vector<8x128xi32>
      %23 = arith.cmpi eq, %3, %22 : vector<8x128xi32>
      %cst_12 = arith.constant 0.000000e+00 : f32
      %24 = vector.broadcast %cst_12 : f32 to vector<8x128xf32>
      %25 = arith.select %23, %19, %24 : vector<8x128xi1>, vector<8x128xf32>
      %26 = arith.addf %12, %25 : vector<8x128xf32>
      %27 = arith.addf %11, %19 : vector<8x128xf32>
      %c0_13 = arith.constant 0 : index
      %c128 = arith.constant 128 : index
      %28 = vector.load %arg2[%c0_13, %c128] : memref<8x256xf32, #tpu.memory_space<vmem>>, vector<8x128xf32>
      %cst_14 = arith.constant 3.000000e+01 : f32
      %29 = vector.broadcast %cst_14 : f32 to vector<8x128xf32>
      %30 = arith.mulf %29, %28 : vector<8x128xf32>
      %31 = math.exp %30 : vector<8x128xf32>
      %c128_i32 = arith.constant 128 : i32
      %32 = vector.broadcast %c128_i32 : i32 to vector<8x1xi32>
      %33 = arith.subi %15, %32 : vector<8x1xi32>
      %34 = vector.broadcast %33 : vector<8x1xi32> to vector<8x128xi32>
      %35 = arith.cmpi eq, %3, %34 : vector<8x128xi32>
      %cst_15 = arith.constant 0.000000e+00 : f32
      %36 = vector.broadcast %cst_15 : f32 to vector<8x128xf32>
      %37 = arith.select %35, %31, %36 : vector<8x128xi1>, vector<8x128xf32>
      %38 = arith.addf %26, %37 : vector<8x128xf32>
      %39 = arith.addf %27, %31 : vector<8x128xf32>
      %c0_16 = arith.constant 0 : index
      %c0_17 = arith.constant 0 : index
      %40 = vector.load %arg5[%c0_16, %c0_17] : memref<8x128xf32, #tpu.memory_space<vmem>>, vector<8x128xf32>
      tpu.vector_store %arg5[%c0_16, %c0_17], %39 {strides = array<i32>} : memref<8x128xf32, #tpu.memory_space<vmem>>, vector<8x128xf32>,
      %c0_18 = arith.constant 0 : index
      %c0_19 = arith.constant 0 : index
      %41 = vector.load %arg6[%c0_18, %c0_19] : memref<8x128xf32, #tpu.memory_space<vmem>>, vector<8x128xf32>
      tpu.vector_store %arg6[%c0_18, %c0_19], %38 {strides = array<i32>} : memref<8x128xf32, #tpu.memory_space<vmem>>, vector<8x128xf32>,
    } else {
    }
    %c1_i32_3 = arith.constant 1 : i32
    %8 = arith.cmpi eq, %arg1, %c1_i32_3 : i32
    %9 = arith.extui %8 : i1 to i32
    %c0_i32_4 = arith.constant 0 : i32
    %10 = arith.cmpi ne, %9, %c0_i32_4 : i32
    scf.if %10 {
      %c0_5 = arith.constant 0 : index
      %c0_6 = arith.constant 0 : index
      %11 = vector.load %arg5[%c0_5, %c0_6] : memref<8x128xf32, #tpu.memory_space<vmem>>, vector<8x128xf32>
      %c0_7 = arith.constant 0 : index
      %c0_8 = arith.constant 0 : index
      %12 = vector.load %arg6[%c0_7, %c0_8] : memref<8x128xf32, #tpu.memory_space<vmem>>, vector<8x128xf32>
      %c256_i32 = arith.constant 256 : i32
      %13 = vector.broadcast %c256_i32 : i32 to vector<8x1xi32>
      %14 = arith.subi %4, %13 : vector<8x1xi32>
      %c0_9 = arith.constant 0 : index
      %c0_10 = arith.constant 0 : index
      %15 = vector.load %arg2[%c0_9, %c0_10] : memref<8x256xf32, #tpu.memory_space<vmem>>, vector<8x128xf32>
      %cst = arith.constant 3.000000e+01 : f32
      %16 = vector.broadcast %cst : f32 to vector<8x128xf32>
      %17 = arith.mulf %16, %15 : vector<8x128xf32>
      %18 = math.exp %17 : vector<8x128xf32>
      %c0_i32_11 = arith.constant 0 : i32
      %19 = vector.broadcast %c0_i32_11 : i32 to vector<8x1xi32>
      %20 = arith.subi %14, %19 : vector<8x1xi32>
      %21 = vector.broadcast %20 : vector<8x1xi32> to vector<8x128xi32>
      %22 = arith.cmpi eq, %3, %21 : vector<8x128xi32>
      %cst_12 = arith.constant 0.000000e+00 : f32
      %23 = vector.broadcast %cst_12 : f32 to vector<8x128xf32>
      %24 = arith.select %22, %18, %23 : vector<8x128xi1>, vector<8x128xf32>
      %25 = arith.addf %12, %24 : vector<8x128xf32>
      %c124_i32 = arith.constant 124 : i32
      %26 = vector.broadcast %c124_i32 : i32 to vector<8x128xi32>
      %27 = arith.cmpi slt, %3, %26 : vector<8x128xi32>
      %cst_13 = arith.constant 0.000000e+00 : f32
      %28 = vector.broadcast %cst_13 : f32 to vector<8x128xf32>
      %29 = arith.select %27, %18, %28 : vector<8x128xi1>, vector<8x128xf32>
      %30 = arith.addf %11, %29 : vector<8x128xf32>
      %c0_14 = arith.constant 0 : index
      %c0_15 = arith.constant 0 : index
      %31 = vector.load %arg5[%c0_14, %c0_15] : memref<8x128xf32, #tpu.memory_space<vmem>>, vector<8x128xf32>
      tpu.vector_store %arg5[%c0_14, %c0_15], %30 {strides = array<i32>} : memref<8x128xf32, #tpu.memory_space<vmem>>, vector<8x128xf32>,
      %c0_16 = arith.constant 0 : index
      %c0_17 = arith.constant 0 : index
      %32 = vector.load %arg6[%c0_16, %c0_17] : memref<8x128xf32, #tpu.memory_space<vmem>>, vector<8x128xf32>
      tpu.vector_store %arg6[%c0_16, %c0_17], %25 {strides = array<i32>} : memref<8x128xf32, #tpu.memory_space<vmem>>, vector<8x128xf32>,
      %c0_18 = arith.constant 0 : index
      %c0_19 = arith.constant 0 : index
      %33 = vector.load %arg6[%c0_18, %c0_19] : memref<8x128xf32, #tpu.memory_space<vmem>>, vector<8x128xf32>
      %cst_20 = arith.constant dense<0.000000e+00> : vector<8xf32>
      %34 = vector.multi_reduction <add>, %33, %cst_20 [1] : vector<8x128xf32> to vector<8xf32>
      %35 = vector.shape_cast %34 : vector<8xf32> to vector<8x1xf32>
      %c0_21 = arith.constant 0 : index
      %c0_22 = arith.constant 0 : index
      %36 = vector.load %arg5[%c0_21, %c0_22] : memref<8x128xf32, #tpu.memory_space<vmem>>, vector<8x128xf32>
      %cst_23 = arith.constant dense<0.000000e+00> : vector<8xf32>
      %37 = vector.multi_reduction <add>, %36, %cst_23 [1] : vector<8x128xf32> to vector<8xf32>
      %38 = vector.shape_cast %37 : vector<8xf32> to vector<8x1xf32>
      %39 = math.log %35 : vector<8x1xf32>
      %cst_24 = arith.constant 1.200000e+01 : f32
      %40 = vector.broadcast %cst_24 : f32 to vector<8x1xf32>
      %41 = arith.subf %39, %40 : vector<8x1xf32>
      %cst_25 = arith.constant 6.14421242E-6 : f32
      %42 = vector.broadcast %cst_25 : f32 to vector<8x1xf32>
      %43 = arith.mulf %35, %42 : vector<8x1xf32>
      %44 = arith.subf %38, %35 : vector<8x1xf32>
      %45 = arith.addf %43, %44 : vector<8x1xf32>
      %46 = math.log %45 : vector<8x1xf32>
      %47 = arith.subf %41, %46 : vector<8x1xf32>
      %c0_26 = arith.constant 0 : index
      %c0_27 = arith.constant 0 : index
      %48 = vector.load %arg4[%c0_26, %c0_27] : memref<8x1xf32, #tpu.memory_space<vmem>>, vector<8x1xf32>
      tpu.vector_store %arg4[%c0_26, %c0_27], %47 {strides = array<i32>} : memref<8x1xf32, #tpu.memory_space<vmem>>, vector<8x1xf32>,
    } else {
    }
    return
  }
  func.func @transform_0(%arg0: i32, %arg1: i32) -> (i32, i32) {
    %c0_i32 = arith.constant 0 : i32
    return %arg0, %arg1 : i32, i32
  }
  func.func @transform_1(%arg0: i32, %arg1: i32) -> (i32, i32) {
    %c0_i32 = arith.constant 0 : i32
    %c0_i32_0 = arith.constant 0 : i32
    return %arg0, %c0_i32 : i32, i32
  }
  func.func @transform_2(%arg0: i32, %arg1: i32) -> (i32, i32) {
    %c0_i32 = arith.constant 0 : i32
    %c0_i32_0 = arith.constant 0 : i32
    return %arg0, %c0_i32 : i32, i32
  }
}

</mosaic_0001>

<llo_original>
// kernel: tpu_custom_call.1
$region0: #{tpu_custom_call.1}
  #allocation0 [shape = 'u32[]', space=smem, size = 0x4, offset = 0x4, fixed_abs, tag = 'smem constant byte address 0x4 - core index']
  #allocation1 [shape = 'u32[144,128]{1,0:T(1,128)}', space=vmem, size = 0x12000, scoped, tag = 'internal scratch']
  #allocation2 [shape = 'f32[8,128]{1,0:T(8,128)}', space=vmem, size = 0x1000, scoped, tag = 'scratch operand']
  #allocation3 [shape = 'f32[8,128]{1,0:T(8,128)}', space=vmem, size = 0x1000, scoped, tag = 'scratch operand']
  %s0 = inlined_call_operand.hbm [shape: f32[20,380], index: 0, kind: input, shape index: {}]
  %s1 = inlined_call_operand.vmem [shape: s32[20,1], index: 1, kind: input, shape index: {}]
  %s2 = inlined_call_operand.vmem [shape: f32[20,1], index: 2, kind: output, shape index: {}]
  %s3 = sld [smem:[#allocation0]]
  $region57: #{tpu_custom_call.1} parent=0
    _
  %s5 = ssub.s32 1, %s3
  %s6 = scalar_select 0, %s5, %s3
  $region1: #{tpu_custom_call.1} parent=0
    #allocation4 [shape = 'u8[16384]{0}', space=vmem, size = 0x4000, scoped, tag = 'input window, operand 0']
    #allocation5 [shape = 's32[2]{0}', space=sflag, size = 0x8, scoped, tag = 'scoped memory for tpu_custom_call.1']
    %7 = vsyncpa [#allocation5], 0
    %s8 = scalar_lea.sflag [#allocation5], 1
    %9 = vsyncpa %s8, 0
    loop: start=0, step=1, limit=8
    $region2: #{tpu_custom_call.1} parent=1 // loop_pre_header
      _
    $region3: #{tpu_custom_call.1} parent=1 // loop_header
      %s11 = sphi 0, %s15
      %p12 = scmp.ge.s32.totalorder %s11, 8
      %s18 = sphi 0, %s30
      %s19 = sphi 0, %s26
      %s20 = sphi 0, %s18
      %s21 = sphi 0, %s19
      %s22 = sphi 0, %s20
      %s23 = sphi 0, %s21
      %s35 = sphi 0, %s37
      %s38 = sphi 0, %s35
      %s39 = sphi 0, %s38
      %s55 = sphi 0, %s39
      %s61 = sphi 0, %s63
      %s64 = sphi 0, %s61
      %s65 = sphi 0, %s64
      %s81 = sphi 0, %s65
      %s87 = sphi 0, %s89
      %s90 = sphi 0, %s87
      %s91 = sphi 0, %s90
      %s107 = sphi 0, %s91
    $region4: #{tpu_custom_call.1} parent=1 // loop_header_branch
      %14 = sbr.rel (%p12) target = $region8
    $region5: #{tpu_custom_call.1} parent=1 // loop_body
      %s16 = ssub.s32 %s11, 1
      %s17 = ssub.s32 %s11, 2
      %s24 = sadd.s32 1, %s19
      %p25 = scmp.ge.s32.totalorder %s24, 2
      %s26 = scalar_select %p25, 0, %s24
      %s27 = sadd.s32 1, %s18
      %s28 = scalar_select %p25, %s27, %s18
      %p29 = scmp.ge.s32.totalorder %s28, 3
      %s30 = scalar_select %p29, 0, %s28
      %s31 = ssub.s32 %s18, %s30
      %s32 = ssub.s32 %s19, %s26
      %s33 = sor.u32 %s31, %s32
      %p34 = scmp.eq.s32.totalorder %s33, 0
      %s36 = sadd.s32 %s35, 1
      %s37 = scalar_select %p34, %s35, %s36
      %p40 = pneg %p34
      %p41 = scmp.eq.s32.totalorder %s11, 5
      %p42 = por %p40, %p41
      %p43 = scmp.ne.s32.totalorder %s35, %s38
      %p44 = scmp.eq.s32.totalorder %s11, 0
      %p45 = por %p43, %p44
      %p46 = scmp.ne.s32.totalorder %s35, %s38
      %p47 = scmp.eq.s32.totalorder %s16, 5
      %p48 = por %p46, %p47
      %p49 = scmp.ne.s32.totalorder %s38, %s39
      %p50 = scmp.eq.s32.totalorder %s16, 0
      %p51 = por %p49, %p50
      %p52 = scmp.ne.s32.totalorder %s38, %s39
      %p53 = scmp.eq.s32.totalorder %s17, 5
      %p54 = por %p52, %p53
      %p56 = scmp.ne.s32.totalorder %s39, %s55
      %p57 = scmp.eq.s32.totalorder %s17, 0
      %p58 = por %p56, %p57
      %s59 = ssub.s32 %s18, %s30
      %p60 = scmp.eq.s32.totalorder %s59, 0
      %s62 = sadd.s32 %s61, 1
      %s63 = scalar_select %p60, %s61, %s62
      %p66 = pneg %p60
      %p67 = scmp.eq.s32.totalorder %s11, 5
      %p68 = por %p66, %p67
      %p69 = scmp.ne.s32.totalorder %s61, %s64
      %p70 = scmp.eq.s32.totalorder %s11, 0
      %p71 = por %p69, %p70
      %p72 = scmp.ne.s32.totalorder %s61, %s64
      %p73 = scmp.eq.s32.totalorder %s16, 5
      %p74 = por %p72, %p73
      %p75 = scmp.ne.s32.totalorder %s64, %s65
      %p76 = scmp.eq.s32.totalorder %s16, 0
      %p77 = por %p75, %p76
      %p78 = scmp.ne.s32.totalorder %s64, %s65
      %p79 = scmp.eq.s32.totalorder %s17, 5
      %p80 = por %p78, %p79
      %p82 = scmp.ne.s32.totalorder %s65, %s81
      %p83 = scmp.eq.s32.totalorder %s17, 0
      %p84 = por %p82, %p83
      %s85 = ssub.s32 %s18, %s30
      %p86 = scmp.eq.s32.totalorder %s85, 0
      %s88 = sadd.s32 %s87, 1
      %s89 = scalar_select %p86, %s87, %s88
      %p92 = pneg %p86
      %p93 = scmp.eq.s32.totalorder %s11, 5
      %p94 = por %p92, %p93
      %p95 = scmp.ne.s32.totalorder %s87, %s90
      %p96 = scmp.eq.s32.totalorder %s11, 0
      %p97 = por %p95, %p96
      %p98 = scmp.ne.s32.totalorder %s87, %s90
      %p99 = scmp.eq.s32.totalorder %s16, 5
      %p100 = por %p98, %p99
      %p101 = scmp.ne.s32.totalorder %s90, %s91
      %p102 = scmp.eq.s32.totalorder %s16, 0
      %p103 = por %p101, %p102
      %p104 = scmp.ne.s32.totalorder %s90, %s91
      %p105 = scmp.eq.s32.totalorder %s17, 5
      %p106 = por %p104, %p105
      %p108 = scmp.ne.s32.totalorder %s91, %s107
      %p109 = scmp.eq.s32.totalorder %s17, 0
      %p110 = por %p108, %p109
      %p111 = scmp.le.s32.totalorder 1, %s11
      %p112 = scmp.lt.s32.totalorder %s11, 7
      %p113 = pnand %p111, %p112
      %p114 = pneg %p113
      // Predicated region
      $region9: #{tpu_custom_call.1} parent=5 // pred_check
        _
      $region10: #{tpu_custom_call.1} parent=5 // pred_check_branch
        %116 = sbr.rel (%p113) target = $region12
      $region11: #{tpu_custom_call.1} parent=5 // pred_region
        %s117 = ssub.s32 %s11, 1
      $region12: #{tpu_custom_call.1} parent=5 // pred_fallthru
        _
      %p118 = scmp.lt.s32.totalorder %s11, 6
      // Predicated region
      $region13: #{tpu_custom_call.1} parent=5 // pred_check
        %p119 = pneg %p118
      $region14: #{tpu_custom_call.1} parent=5 // pred_check_branch
        %121 = sbr.rel (%p119) target = $region16
      $region15: #{tpu_custom_call.1} parent=5 // pred_region
        // Predicated region
        $region17: #{tpu_custom_call.1} parent=15 // pred_check
          %p122 = pneg %p45
        $region18: #{tpu_custom_call.1} parent=15 // pred_check_branch
          %124 = sbr.rel (%p122) target = $region20
        $region19: #{tpu_custom_call.1} parent=15 // pred_region
          %s125 = sand.u32 %s35, 1
          %s126 = scalar_lea.sflag [#allocation5], %s125
          %s127 = sand.u32 %s35, 1
          %s128 = smul.addr %s127, 16
          %s129 = scalar_lea.vmem [#allocation4], %s128
          %s130 = smul.u32 2, %s19
          %s131 = ssub.s32 3, %s130
          %p132 = scmp.lt.s32.totalorder %s131, 2
          %s133 = scalar_select %p132, %s131, 2
          %s134 = smul.u32 128, %s133
          %s136 = ssub.s32 256, %s134
          %137 = vsyncadd %s126, %s136
          %p138 = scmp.ne.s32.totalorder 0, %s134
          %s139 = smul.addr %s18, 3
          %s140 = sadd.s32 %s130, %s139
          %s141 = smul.addr %s140, 128
          %s142 = scalar_lea.hbm %s0, %s141
          %s143 = smul.u32 %s133, 8
          %s144 = sshll.u32 %s143, 4
          %s145 = sshll.u32 %s129, 4
          %s146 = int_to_ptr.vmem [resolvable:$true] %s145
          %148 = dma.hbm_to_vmem [thread:$0]  (%p138), %s142, %s144, %s146, %s126
        $region20: #{tpu_custom_call.1} parent=15 // pred_fallthru
          _
        // Predicated region
        $region21: #{tpu_custom_call.1} parent=15 // pred_check
          %p149 = pneg %p71
        $region22: #{tpu_custom_call.1} parent=15 // pred_check_branch
          %151 = sbr.rel (%p149) target = $region24
        $region23: #{tpu_custom_call.1} parent=15 // pred_region
          %p152 = scmp.lt.s32.totalorder %s18, 2
          %s153 = scalar_select %p152, %s18, 2
          %s154 = smul.addr %s153, 8
          %s155 = scalar_lea.vmem %s1, %s154
        $region24: #{tpu_custom_call.1} parent=15 // pred_fallthru
          _
      $region16: #{tpu_custom_call.1} parent=5 // pred_fallthru
        _
      %p156 = scmp.le.s32.totalorder 1, %s11
      %p157 = scmp.lt.s32.totalorder %s11, 7
      %p158 = pnand %p156, %p157
      %p159 = pneg %p158
      // Predicated region
      $region25: #{tpu_custom_call.1} parent=5 // pred_check
        _
      $region26: #{tpu_custom_call.1} parent=5 // pred_check_branch
        %161 = sbr.rel (%p158) target = $region28
      $region27: #{tpu_custom_call.1} parent=5 // pred_region
        %s162 = ssub.s32 %s11, 1
        %s163 = sand.u32 %s38, 1
        %s164 = scalar_lea.sflag [#allocation5], %s163
        %s165 = sand.u32 %s38, 1
        %s166 = smul.addr %s165, 16
        %s167 = scalar_lea.vmem [#allocation4], %s166
        // Predicated region
        $region29: #{tpu_custom_call.1} parent=27 // pred_check
          %p168 = pneg %p51
        $region30: #{tpu_custom_call.1} parent=27 // pred_check_branch
          %170 = sbr.rel (%p168) target = $region32
        $region31: #{tpu_custom_call.1} parent=27 // pred_region
          %171 = dma.done %s164, 256
        $region32: #{tpu_custom_call.1} parent=27 // pred_fallthru
          _
        %s172 = sand.u32 %s38, 1
        %s173 = scalar_lea.sflag [#allocation5], %s172
        %s174 = sand.u32 %s38, 1
        %s175 = smul.addr %s174, 16
        %s176 = scalar_lea.vmem [#allocation4], %s175
        %p177 = pneg %p51
        %p178 = pneg %p48
        %p179 = scmp.lt.s32.totalorder %s20, 2
        %s180 = scalar_select %p179, %s20, 2
        %s181 = smul.addr %s180, 8
        %s182 = scalar_lea.vmem %s1, %s181
        %p183 = pneg %p77
        %p184 = pneg %p74
        %p185 = pneg %p103
        %p186 = pneg %p100
        %p187 = scmp.lt.s32.totalorder %s20, 2
        %s188 = scalar_select %p187, %s20, 2
        %s189 = smul.addr %s188, 8
        %s190 = scalar_lea.vmem %s2, %s189
        %s191 = smul.u32 2, %s21
        %s192 = ssub.s32 3, %s191
        %p193 = scmp.lt.s32.totalorder %s192, 2
        %s194 = scalar_select %p193, %s192, 2
        %s195 = smul.u32 128, %s194
        %p196 = scmp.lt.s32.totalorder %s20, 2
        %s197 = scalar_select %p196, %s20, 2
        %s198 = smul.addr %s197, 8
        %s199 = scalar_lea.vmem %s1, %s198
        %p200 = scmp.lt.s32.totalorder %s20, 2
        %s201 = scalar_select %p200, %s20, 2
        %s202 = smul.addr %s201, 8
        %s203 = scalar_lea.vmem %s2, %s202
        %p204 = scmp.eq.s32.totalorder %s21, 0
        // Predicated region
        $region33: #{tpu_custom_call.1} parent=27 // pred_check
          %p205 = pneg %p204
        $region34: #{tpu_custom_call.1} parent=27 // pred_check_branch
          %207 = sbr.rel (%p205) target = $region36
        $region35: #{tpu_custom_call.1} parent=27 // pred_region
          %208 = vst [vmem:[#allocation2] sm:$0xff] 0.0
          %209 = vst [vmem:[#allocation3] sm:$0xff] 0.0
        $region36: #{tpu_custom_call.1} parent=27 // pred_fallthru
          _
        %v210 = vlaneseq
        %v211 = vand.u32 %v210, 127
        %v212 = vld [vmem:[%s199] sm:$0xff]
        %p213 = scmp.lt.s32.totalorder %s21, 1
        // Predicated region
        $region37: #{tpu_custom_call.1} parent=27 // pred_check
          %p214 = pneg %p213
        $region38: #{tpu_custom_call.1} parent=27 // pred_check_branch
          %216 = sbr.rel (%p214) target = $region40
        $region39: #{tpu_custom_call.1} parent=27 // pred_region
          %v217 = vld [vmem:[#allocation2] sm:$0xff]
          %v218 = vld [vmem:[#allocation3] sm:$0xff]
          %s219 = smul.u32 %s21, 256
          %v220 = vstv %s219
          %v221 = vsub.s32 %v212, %v220
          %v222 = vld [vmem:[%s167] sm:$0xff]
          %v223 = vmul.f32 %v222, 30.0
          %v224 = vmul.f32 %v223, 1.442695
          %v225 = vpow.pop %v224
          %226 = vset.pattern.permute.xlu0 0
          %227 = vperm.xlu0 %226, %v221
          %v228 = vpop.permute.xlu0 %227
          %vm229 = vcmp.eq.s32.totalorder %v211, %v228
          %v230 = vsel %vm229, %v225, 0.0
          %v231 = vadd.f32 %v218, %v230
          %v232 = vadd.f32 %v217, %v225
          %v233 = vld [vmem:[%s167 + $0x8] sm:$0xff]
          %v234 = vmul.f32 %v233, 30.0
          %v235 = vmul.f32 %v234, 1.442695
          %v236 = vpow.pop %v235
          %v237 = vsub.s32 %v221, 128
          %238 = vset.pattern.permute.xlu0 0
          %239 = vperm.xlu0 %238, %v237
          %v240 = vpop.permute.xlu0 %239
          %vm241 = vcmp.eq.s32.totalorder %v211, %v240
          %v242 = vsel %vm241, %v236, 0.0
          %v243 = vadd.f32 %v231, %v242
          %v244 = vadd.f32 %v232, %v236
          %245 = vst [vmem:[#allocation2] sm:$0xff] %v244
          %246 = vst [vmem:[#allocation3] sm:$0xff] %v243
        $region40: #{tpu_custom_call.1} parent=27 // pred_fallthru
          _
        %p247 = scmp.eq.s32.totalorder %s21, 1
        // Predicated region
        $region41: #{tpu_custom_call.1} parent=27 // pred_check
          %p248 = pneg %p247
        $region42: #{tpu_custom_call.1} parent=27 // pred_check_branch
          %250 = sbr.rel (%p248) target = $region44
        $region43: #{tpu_custom_call.1} parent=27 // pred_region
          %v251 = vld [vmem:[#allocation2] sm:$0xff]
          %v252 = vld [vmem:[#allocation3] sm:$0xff]
          %v253 = vsub.s32 %v212, 256
          %v254 = vld [vmem:[%s167] sm:$0xff]
          %v255 = vmul.f32 %v254, 30.0
          %v256 = vmul.f32 %v255, 1.442695
          %v257 = vpow.pop %v256
          %258 = vset.pattern.permute.xlu0 0
          %259 = vperm.xlu0 %258, %v253
          %v260 = vpop.permute.xlu0 %259
          %vm261 = vcmp.eq.s32.totalorder %v211, %v260
          %v262 = vsel %vm261, %v257, 0.0
          %v263 = vadd.f32 %v252, %v262
          %vm264 = vcmp.lt.s32.totalorder %v211, 124
          %v265 = vsel %vm264, %v257, 0.0
          %v266 = vadd.f32 %v251, %v265
          %267 = vst [vmem:[#allocation2] sm:$0xff] %v266
          %268 = vst [vmem:[#allocation3] sm:$0xff] %v263
          %v269 = vld [vmem:[#allocation3] sm:$0xff]
          %270 = vadd.xlane.f32.xlu0 %v269
          %v271 = vpop.xlane.xlu0 %270
          %v272 = vld [vmem:[#allocation2] sm:$0xff]
          %273 = vadd.xlane.f32.xlu0 %v272
          %v274 = vpop.xlane.xlu0 %273
          %v275 = vlog2.pop %v271
          %v276 = vmul.f32 %v275, 0.6931472
          %v277 = vsub.f32 %v276, 12.0
          %v278 = vmul.f32 %v271, 6.1442124e-06
          %v279 = vsub.f32 %v274, %v271
          %v280 = vadd.f32 %v278, %v279
          %v281 = vlog2.pop %v280
          %v282 = vmul.f32 %v281, 0.6931472
          %v283 = vsub.f32 %v277, %v282
          %vm284 = vcmask 7168
          %285 = vst.msk [vmem:[%s203] sm:$0xff] %vm284, %v283
        $region44: #{tpu_custom_call.1} parent=27 // pred_fallthru
          _
        %p286 = scmp.lt.s32.totalorder %s20, 2
        %s287 = scalar_select %p286, %s20, 2
        %s288 = smul.addr %s287, 8
        %s289 = scalar_lea.vmem %s2, %s288
        // Predicated region
        $region45: #{tpu_custom_call.1} parent=27 // pred_check
          %p290 = pneg %p100
        $region46: #{tpu_custom_call.1} parent=27 // pred_check_branch
          %292 = sbr.rel (%p290) target = $region48
        $region47: #{tpu_custom_call.1} parent=27 // pred_region
          _
        $region48: #{tpu_custom_call.1} parent=27 // pred_fallthru
          _
      $region28: #{tpu_custom_call.1} parent=5 // pred_fallthru
        _
      %p293 = scmp.le.s32.totalorder 2, %s11
      // Predicated region
      $region49: #{tpu_custom_call.1} parent=5 // pred_check
        %p294 = pneg %p293
      $region50: #{tpu_custom_call.1} parent=5 // pred_check_branch
        %296 = sbr.rel (%p294) target = $region52
      $region51: #{tpu_custom_call.1} parent=5 // pred_region
        %s297 = ssub.s32 %s11, 2
        // Predicated region
        $region53: #{tpu_custom_call.1} parent=51 // pred_check
          %p298 = pneg %p106
        $region54: #{tpu_custom_call.1} parent=51 // pred_check_branch
          %300 = sbr.rel (%p298) target = $region56
        $region55: #{tpu_custom_call.1} parent=51 // pred_region
          %p301 = scmp.lt.s32.totalorder %s22, 2
          %s302 = scalar_select %p301, %s22, 2
          %s303 = smul.addr %s302, 8
          %s304 = scalar_lea.vmem %s2, %s303
        $region56: #{tpu_custom_call.1} parent=51 // pred_fallthru
          _
      $region52: #{tpu_custom_call.1} parent=5 // pred_fallthru
        _
    $region6: #{tpu_custom_call.1} parent=1 // loop_footer
      %s15 = sadd.s32 1, %s11
    $region7: #{tpu_custom_call.1} parent=1 // loop_footer_branch
      %10 = sbr.rel target = $region3
    $region8: #{tpu_custom_call.1} parent=1 // loop_exit
      _
    %305 = vsyncpa [#allocation5], 1
    %s306 = scalar_lea.sflag [#allocation5], 1
    %307 = vsyncpa %s306, 1

</llo_original>
